<compile_context>
chip_gen: v5e
topology: v5e:2x2
jax: 0.10.0
libtpu: 0.0.40
codegen_flags: <defaults>
</compile_context>

<pallas_src>
import jax
import jax.numpy as jnp
from jax import lax
from jax.experimental import pallas as pl
from jax.experimental.pallas import tpu as pltpu

D_in = 28 * 28   # 784
H1 = 300
D_out = 10

# Lane-aligned (multiples of 128) padded dims.
D_IN_PAD = 896     # 7 * 128
H1_PAD = 384       # 3 * 128
D_OUT_PAD = 128    # 1 * 128


def _round_up(n, m):
    return ((n + m - 1) // m) * m


def _mlp_kernel(x_ref, w1_ref, w2_ref, o_ref):
    # x_ref:  (TB, D_IN_PAD)      bf16
    # w1_ref: (D_IN_PAD, H1_PAD)  bf16   (linear1 weight, pre-transposed + zero-padded)
    # w2_ref: (H1_PAD, D_OUT_PAD) bf16   (linear2 weight, pre-transposed + zero-padded)
    # o_ref:  (TB, D_OUT_PAD)     f32    log-probabilities (padded lanes hold -inf)

    # linear1 + relu  (bf16 inputs, f32 MXU accumulation)
    h = jnp.dot(x_ref[...], w1_ref[...], preferred_element_type=jnp.float32)
    h = jnp.maximum(h, 0.0)

    # linear2 + relu (triple clamp in the reference == single relu)
    z = jnp.dot(h.astype(jnp.bfloat16), w2_ref[...],
                preferred_element_type=jnp.float32)
    z = jnp.maximum(z, 0.0)

    # Padded logit lanes (>= D_out) carry zeros from the zero-padded weights; mask
    # them to -inf so they don't corrupt the log_softmax normalizer.
    lane = lax.broadcasted_iota(jnp.int32, z.shape, dimension=1)
    z = jnp.where(lane < D_out, z, -jnp.inf)

    # Numerically-stable log_softmax along dim=1.
    m = jnp.max(z, axis=1, keepdims=True)
    s = z - m
    lse = jnp.log(jnp.sum(jnp.exp(s), axis=1, keepdims=True))
    o_ref[...] = s - lse


def prepare_params(w1, w2):
    """One-time parameter prep (do NOT call per forward).

    w1: (H1, D_in) f32, w2: (D_out, H1) f32 (PyTorch nn.Linear layout)
    Returns bf16 pre-transposed, zero-padded weights:
      w1p: (D_IN_PAD, H1_PAD), w2p: (H1_PAD, D_OUT_PAD)
    """
    w1p = jnp.zeros((D_IN_PAD, H1_PAD), jnp.float32).at[:D_in, :H1].set(w1.T)
    w2p = jnp.zeros((H1_PAD, D_OUT_PAD), jnp.float32).at[:H1, :D_out].set(w2.T)
    return w1p.astype(jnp.bfloat16), w2p.astype(jnp.bfloat16)


def two_layer_net(x, w1p, w2p, *, block_b=256):
    """Forward pass. x: (B, D_in) f32; w1p/w2p from prepare_params().

    block_b: batch-tile rows per grid step (256 fills the v6e/v7x MXU; use 128 on v5e).
    """
    B = x.shape[0]
    TB = min(block_b, _round_up(B, 8))
    B_pad = _round_up(B, TB)

    # Pad batch rows + feature lanes with zeros and stream activations as bf16.
    xp = jnp.pad(x, ((0, B_pad - B), (0, D_IN_PAD - D_in))).astype(jnp.bfloat16)

    flops = 2 * B_pad * (D_IN_PAD * H1_PAD + H1_PAD * D_OUT_PAD)
    bytes_accessed = (xp.size * 2 + w1p.size * 2 + w2p.size * 2
                      + B_pad * D_OUT_PAD * 4)

    out = pl.pallas_call(
        _mlp_kernel,
        out_shape=jax.ShapeDtypeStruct((B_pad, D_OUT_PAD), jnp.float32),
        grid_spec=pltpu.PrefetchScalarGridSpec(
            num_scalar_prefetch=0,
            grid=(B_pad // TB,),
            in_specs=[
                pl.BlockSpec((TB, D_IN_PAD), lambda i: (i, 0)),
                # Weights: constant block index -> DMA'd once, VMEM-resident
                # across all batch tiles.
                pl.BlockSpec((D_IN_PAD, H1_PAD), lambda i: (0, 0)),
                pl.BlockSpec((H1_PAD, D_OUT_PAD), lambda i: (0, 0)),
            ],
            out_specs=pl.BlockSpec((TB, D_OUT_PAD), lambda i: (i, 0)),
        ),
        compiler_params=pltpu.CompilerParams(
            dimension_semantics=("parallel",),   # shards batch tiles across v7x's 2 TCs
            vmem_limit_bytes=8 << 20,
        ),
        cost_estimate=pl.CostEstimate(
            flops=flops,
            transcendentals=B_pad * (D_OUT_PAD + 1),
            bytes_accessed=bytes_accessed,
        ),
    )(xp, w1p, w2p)

    return out[:B, :D_out]


if __name__ == "__main__":
    key = jax.random.PRNGKey(0)
    kx, k1, k2 = jax.random.split(key, 3)

    B = 8
    # Deterministic synthetic parameters (PyTorch nn.Linear weight shapes).
    x = jax.random.normal(kx, (B, D_in), dtype=jnp.float32)
    w1 = jax.random.normal(k1, (H1, D_in), dtype=jnp.float32) * (1.0 / jnp.sqrt(D_in))
    w2 = jax.random.normal(k2, (D_out, H1), dtype=jnp.float32) * (1.0 / jnp.sqrt(H1))

    # One-time parameter prep (transpose + pad + bf16 cast happens here, not per call).
    w1p, w2p = prepare_params(w1, w2)

    fwd = jax.jit(two_layer_net)
    out = fwd(x, w1p, w2p)
    jax.block_until_ready(out)

    # Plain-JAX reference of the same (bf16-weight, f32-accumulate) forward pass.
    x_q = x.astype(jnp.bfloat16).astype(jnp.float32)
    w1_q = w1.T.astype(jnp.bfloat16).astype(jnp.float32)
    w2_q = w2.T.astype(jnp.bfloat16).astype(jnp.float32)
    h_ref = jnp.maximum(x_q @ w1_q, 0.0)
    h_q = h_ref.astype(jnp.bfloat16).astype(jnp.float32)
    z_ref = jnp.maximum(h_q @ w2_q, 0.0)
    ref = jax.nn.log_softmax(z_ref, axis=1)

    assert out.shape == (B, D_out)
    assert jnp.allclose(out, ref, atol=1e-3, rtol=1e-3), (
        float(jnp.max(jnp.abs(out - ref))))

    print("KERNEL_OK")
</pallas_src>

<mosaic_0001>
module attributes {stable_mosaic.version = 11 : i64} {
  func.func @_mlp_kernel(%arg0: i32, %arg1: memref<8x896xbf16, #tpu.memory_space<vmem>>, %arg2: memref<896x384xbf16, #tpu.memory_space<vmem>>, %arg3: memref<384x128xbf16, #tpu.memory_space<vmem>>, %arg4: memref<8x128xf32, #tpu.memory_space<vmem>>) attributes {dimension_semantics = [#tpu.dimension_semantics<parallel>], iteration_bounds = array<i64: 1>, scalar_prefetch = 0 : i64, scratch_operands = 0 : i64, tpu.core_type = #tpu.core_type<tc>, window_params = [{transform_indices = @transform_0, window_bounds = array<i64: 8, 896>}, {pipeline_mode = #tpu.pipeline_mode<synchronous>, transform_indices = @transform_1, window_bounds = array<i64: 896, 384>}, {pipeline_mode = #tpu.pipeline_mode<synchronous>, transform_indices = @transform_2, window_bounds = array<i64: 384, 128>}, {transform_indices = @transform_3, window_bounds = array<i64: 8, 128>}]} {
    %c0 = arith.constant 0 : index
    %c0_0 = arith.constant 0 : index
    %0 = vector.load %arg1[%c0, %c0_0] : memref<8x896xbf16, #tpu.memory_space<vmem>>, vector<8x896xbf16>
    %c0_1 = arith.constant 0 : index
    %c0_2 = arith.constant 0 : index
    %1 = vector.load %arg2[%c0_1, %c0_2] : memref<896x384xbf16, #tpu.memory_space<vmem>>, vector<896x384xbf16>
    %cst = arith.constant dense<0.000000e+00> : vector<8x384xf32>
    %2 = tpu.matmul %0, %1, %cst {dimension_numbers = #tpu.dot_dimension_numbers<[1], [0], [0], [1], [0, 0, 1, 1], [], []>} : vector<8x896xbf16>, vector<896x384xbf16>, vector<8x384xf32> -> vector<8x384xf32>
    %cst_3 = arith.constant 0.000000e+00 : f32
    %3 = vector.broadcast %cst_3 : f32 to vector<8x384xf32>
    %4 = arith.maximumf %2, %3 : vector<8x384xf32>
    %5 = arith.truncf %4 : vector<8x384xf32> to vector<8x384xbf16>
    %c0_4 = arith.constant 0 : index
    %c0_5 = arith.constant 0 : index
    %6 = vector.load %arg3[%c0_4, %c0_5] : memref<384x128xbf16, #tpu.memory_space<vmem>>, vector<384x128xbf16>
    %cst_6 = arith.constant dense<0.000000e+00> : vector<8x128xf32>
    %7 = tpu.matmul %5, %6, %cst_6 {dimension_numbers = #tpu.dot_dimension_numbers<[1], [0], [0], [1], [0, 0, 1, 1], [], []>} : vector<8x384xbf16>, vector<384x128xbf16>, vector<8x128xf32> -> vector<8x128xf32>
    %cst_7 = arith.constant 0.000000e+00 : f32
    %8 = vector.broadcast %cst_7 : f32 to vector<8x128xf32>
    %9 = arith.maximumf %7, %8 : vector<8x128xf32>
    %10 = tpu.iota {dimensions = array<i32: 1>} : vector<8x128xi32>
    %c10_i32 = arith.constant 10 : i32
    %11 = vector.broadcast %c10_i32 : i32 to vector<8x128xi32>
    %12 = arith.cmpi slt, %10, %11 : vector<8x128xi32>
    %cst_8 = arith.constant 0xFF800000 : f32
    %13 = vector.broadcast %cst_8 : f32 to vector<8x128xf32>
    %14 = arith.select %12, %9, %13 : vector<8x128xi1>, vector<8x128xf32>
    %cst_9 = arith.constant dense<0xFF800000> : vector<8xf32>
    %15 = vector.multi_reduction <maximumf>, %14, %cst_9 [1] : vector<8x128xf32> to vector<8xf32>
    %16 = vector.shape_cast %15 : vector<8xf32> to vector<8x1xf32>
    %17 = vector.broadcast %16 : vector<8x1xf32> to vector<8x128xf32>
    %18 = arith.subf %14, %17 : vector<8x128xf32>
    %19 = math.exp %18 : vector<8x128xf32>
    %cst_10 = arith.constant dense<0.000000e+00> : vector<8xf32>
    %20 = vector.multi_reduction <add>, %19, %cst_10 [1] : vector<8x128xf32> to vector<8xf32>
    %21 = vector.shape_cast %20 : vector<8xf32> to vector<8x1xf32>
    %22 = math.log %21 : vector<8x1xf32>
    %23 = vector.broadcast %22 : vector<8x1xf32> to vector<8x128xf32>
    %24 = arith.subf %18, %23 : vector<8x128xf32>
    %c0_11 = arith.constant 0 : index
    %c0_12 = arith.constant 0 : index
    %25 = vector.load %arg4[%c0_11, %c0_12] : memref<8x128xf32, #tpu.memory_space<vmem>>, vector<8x128xf32>
    tpu.vector_store %arg4[%c0_11, %c0_12], %24 {strides = array<i32>} : memref<8x128xf32, #tpu.memory_space<vmem>>, vector<8x128xf32>,
    return
  }
  func.func @transform_0(%arg0: i32) -> (i32, i32) {
    %c0_i32 = arith.constant 0 : i32
    %c0_i32_0 = arith.constant 0 : i32
    return %arg0, %c0_i32 : i32, i32
  }
  func.func @transform_1(%arg0: i32) -> (i32, i32) {
    %c0_i32 = arith.constant 0 : i32
    %c0_i32_0 = arith.constant 0 : i32
    %c0_i32_1 = arith.constant 0 : i32
    return %c0_i32, %c0_i32_0 : i32, i32
  }
  func.func @transform_2(%arg0: i32) -> (i32, i32) {
    %c0_i32 = arith.constant 0 : i32
    %c0_i32_0 = arith.constant 0 : i32
    %c0_i32_1 = arith.constant 0 : i32
    return %c0_i32, %c0_i32_0 : i32, i32
  }
  func.func @transform_3(%arg0: i32) -> (i32, i32) {
    %c0_i32 = arith.constant 0 : i32
    %c0_i32_0 = arith.constant 0 : i32
    return %arg0, %c0_i32 : i32, i32
  }
}

</mosaic_0001>

<llo_original>
// kernel: two_layer_net.1
$region0: #{two_layer_net.1}
  #allocation0 [shape = 'u32[]', space=smem, size = 0x4, offset = 0x4, fixed_abs, tag = 'smem constant byte address 0x4 - core index']
  #allocation1 [shape = 'u32[72,128]{1,0:T(1,128)}', space=vmem, size = 0x9000, scoped, tag = 'internal scratch']
  %s0 = inlined_call_operand.vmem [shape: bf16[8,896], index: 0, kind: input, shape index: {}]
  %s1 = inlined_call_operand.hbm [shape: bf16[896,384], index: 1, kind: input, shape index: {}]
  %s2 = inlined_call_operand.hbm [shape: bf16[384,128], index: 2, kind: input, shape index: {}]
  %s3 = inlined_call_operand.hbm [shape: f32[8,128], index: 3, kind: output, shape index: {}]
  %s4 = sld [smem:[#allocation0]]
  $region30: #{two_layer_net.1} parent=0
    _
  %s6 = ssub.s32 1, %s4
  %s7 = scalar_select 0, %s6, %s4
  $region1: #{two_layer_net.1} parent=0
    #allocation2 [shape = 'u8[688128]{0}', space=vmem, size = 0xa8000, scoped, tag = 'input window, operand 1, single buffered']
    #allocation3 [shape = 's32[1]{0}', space=sflag, size = 0x4, scoped, tag = 'scoped memory for two_layer_net.1']
    #allocation4 [shape = 's32[1]{0}', space=sflag, size = 0x4, scoped, tag = 'scoped memory for two_layer_net.1']
    #allocation5 [shape = 'u8[98304]{0}', space=vmem, size = 0x18000, scoped, tag = 'input window, operand 2, single buffered']
    #allocation6 [shape = 's32[1]{0}', space=sflag, size = 0x4, scoped, tag = 'scoped memory for two_layer_net.1']
    #allocation7 [shape = 'u8[4096]{0}', space=vmem, size = 0x1000, scoped, tag = 'output window, operand 0, single buffered']
    %8 = vsyncpa [#allocation3], 0
    %9 = vsyncpa [#allocation6], 0
    %10 = vsyncpa [#allocation4], 0
    // Predicated region
    $region2: #{two_layer_net.1} parent=1 // pred_check
      _
    $region3: #{two_layer_net.1} parent=1 // pred_check_branch
      %12 = sbr.rel (0) target = $region5
    $region4: #{two_layer_net.1} parent=1 // pred_region
      _
    $region5: #{two_layer_net.1} parent=1 // pred_fallthru
      _
    // Predicated region
    $region6: #{two_layer_net.1} parent=1 // pred_check
      _
    $region7: #{two_layer_net.1} parent=1 // pred_check_branch
      %14 = sbr.rel (0) target = $region9
    $region8: #{two_layer_net.1} parent=1 // pred_region
      %16 = vsyncadd [#allocation3], 0
      %s17 = sshll.u32 %s1, 4
      %s18 = int_to_ptr.hbm [resolvable:$true] %s17
      %s19 = sshll.u32 [#allocation2], 4
      %s20 = int_to_ptr.vmem [resolvable:$true] %s19
      %25 = dma.hbm_to_vmem [thread:$0]  %s18, 21504, %s20, [#allocation3], 192, 192, 12
    $region9: #{two_layer_net.1} parent=1 // pred_fallthru
      _
    // Predicated region
    $region10: #{two_layer_net.1} parent=1 // pred_check
      _
    $region11: #{two_layer_net.1} parent=1 // pred_check_branch
      %27 = sbr.rel (0) target = $region13
    $region12: #{two_layer_net.1} parent=1 // pred_region
      %29 = vsyncadd [#allocation6], 0
      %s30 = sshll.u32 %s2, 4
      %s31 = int_to_ptr.hbm [resolvable:$true] %s30
      %s32 = sshll.u32 [#allocation5], 4
      %s33 = int_to_ptr.vmem [resolvable:$true] %s32
      %38 = dma.hbm_to_vmem [thread:$0]  %s31, 3072, %s33, [#allocation6], 64, 64, 4
    $region13: #{two_layer_net.1} parent=1 // pred_fallthru
      _
    // Predicated region
    $region14: #{two_layer_net.1} parent=1 // pred_check
      _
    $region15: #{two_layer_net.1} parent=1 // pred_check_branch
      %40 = sbr.rel (0) target = $region17
    $region16: #{two_layer_net.1} parent=1 // pred_region
      %42 = dma.done [#allocation3], 21504
    $region17: #{two_layer_net.1} parent=1 // pred_fallthru
      _
    // Predicated region
    $region18: #{two_layer_net.1} parent=1 // pred_check
      _
    $region19: #{two_layer_net.1} parent=1 // pred_check_branch
      %44 = sbr.rel (0) target = $region21
    $region20: #{two_layer_net.1} parent=1 // pred_region
      %46 = dma.done [#allocation6], 3072
    $region21: #{two_layer_net.1} parent=1 // pred_fallthru
      _
    %v47 = vld [vmem:[%s0] sm:$0xff]
    %v48 = vld [vmem:[%s0 + $0x8] sm:$0xff]
    %v49 = vld [vmem:[%s0 + $0x10] sm:$0xff]
    %v50 = vld [vmem:[%s0 + $0x18] sm:$0xf]
    %v51 = vld [vmem:[#allocation2] sm:$0xff]
    %v52 = vld [vmem:[#allocation2 + $0x8] sm:$0xf]
    %v53 = vld [vmem:[#allocation2 + $0xc] sm:$0xff]
    %v54 = vld [vmem:[#allocation2 + $0x14] sm:$0xf]
    %v55 = vld [vmem:[#allocation2 + $0x18] sm:$0xff]
    %v56 = vld [vmem:[#allocation2 + $0x20] sm:$0xf]
    %v57 = vld [vmem:[#allocation2 + $0x24] sm:$0xff]
    %v58 = vld [vmem:[#allocation2 + $0x2c] sm:$0xf]
    %v59 = vld [vmem:[#allocation2 + $0x30] sm:$0xff]
    %v60 = vld [vmem:[#allocation2 + $0x38] sm:$0xf]
    %v61 = vld [vmem:[#allocation2 + $0x3c] sm:$0xff]
    %v62 = vld [vmem:[#allocation2 + $0x44] sm:$0xf]
    %v63 = vld [vmem:[#allocation2 + $0x48] sm:$0xff]
    %v64 = vld [vmem:[#allocation2 + $0x50] sm:$0xf]
    %v65 = vld [vmem:[#allocation2 + $0x54] sm:$0xff]
    %v66 = vld [vmem:[#allocation2 + $0x5c] sm:$0xf]
    %v67 = vld [vmem:[#allocation2 + $0x60] sm:$0xff]
    %v68 = vld [vmem:[#allocation2 + $0x68] sm:$0xf]
    %v69 = vld [vmem:[#allocation2 + $0x6c] sm:$0xff]
    %v70 = vld [vmem:[#allocation2 + $0x74] sm:$0xf]
    %v71 = vld [vmem:[#allocation2 + $0x78] sm:$0xff]
    %v72 = vld [vmem:[#allocation2 + $0x80] sm:$0xf]
    %v73 = vld [vmem:[#allocation2 + $0x84] sm:$0xff]
    %v74 = vld [vmem:[#allocation2 + $0x8c] sm:$0xf]
    %v75 = vld [vmem:[#allocation2 + $0x90] sm:$0xff]
    %v76 = vld [vmem:[#allocation2 + $0x98] sm:$0xf]
    %v77 = vld [vmem:[#allocation2 + $0x9c] sm:$0xff]
    %v78 = vld [vmem:[#allocation2 + $0xa4] sm:$0xf]
    %v79 = vld [vmem:[#allocation2 + $0xa8] sm:$0xff]
    %v80 = vld [vmem:[#allocation2 + $0xb0] sm:$0xf]
    %v81 = vld [vmem:[#allocation2 + $0xb4] sm:$0xff]
    %v82 = vld [vmem:[#allocation2 + $0xbc] sm:$0xf]
    %v83 = vld [vmem:[#allocation2 + $0xc0] sm:$0xff]
    %v84 = vld [vmem:[#allocation2 + $0xc8] sm:$0xf]
    %v85 = vld [vmem:[#allocation2 + $0xcc] sm:$0xff]
    %v86 = vld [vmem:[#allocation2 + $0xd4] sm:$0xf]
    %v87 = vld [vmem:[#allocation2 + $0xd8] sm:$0xff]
    %v88 = vld [vmem:[#allocation2 + $0xe0] sm:$0xf]
    %v89 = vld [vmem:[#allocation2 + $0xe4] sm:$0xff]
    %v90 = vld [vmem:[#allocation2 + $0xec] sm:$0xf]
    %v91 = vld [vmem:[#allocation2 + $0xf0] sm:$0xff]
    %v92 = vld [vmem:[#allocation2 + $0xf8] sm:$0xf]
    %v93 = vld [vmem:[#allocation2 + $0xfc] sm:$0xff]
    %v94 = vld [vmem:[#allocation2 + $0x104] sm:$0xf]
    %v95 = vld [vmem:[#allocation2 + $0x108] sm:$0xff]
    %v96 = vld [vmem:[#allocation2 + $0x110] sm:$0xf]
    %v97 = vld [vmem:[#allocation2 + $0x114] sm:$0xff]
    %v98 = vld [vmem:[#allocation2 + $0x11c] sm:$0xf]
    %v99 = vld [vmem:[#allocation2 + $0x120] sm:$0xff]
    %v100 = vld [vmem:[#allocation2 + $0x128] sm:$0xf]
    %v101 = vld [vmem:[#allocation2 + $0x12c] sm:$0xff]
    %v102 = vld [vmem:[#allocation2 + $0x134] sm:$0xf]
    %v103 = vld [vmem:[#allocation2 + $0x138] sm:$0xff]
    %v104 = vld [vmem:[#allocation2 + $0x140] sm:$0xf]
    %v105 = vld [vmem:[#allocation2 + $0x144] sm:$0xff]
    %v106 = vld [vmem:[#allocation2 + $0x14c] sm:$0xf]
    %v107 = vld [vmem:[#allocation2 + $0x150] sm:$0xff]
    %v108 = vld [vmem:[#allocation2 + $0x158] sm:$0xf]
    %v109 = vld [vmem:[#allocation2 + $0x15c] sm:$0xff]
    %v110 = vld [vmem:[#allocation2 + $0x164] sm:$0xf]
    %v111 = vld [vmem:[#allocation2 + $0x168] sm:$0xff]
    %v112 = vld [vmem:[#allocation2 + $0x170] sm:$0xf]
    %v113 = vld [vmem:[#allocation2 + $0x174] sm:$0xff]
    %v114 = vld [vmem:[#allocation2 + $0x17c] sm:$0xf]
    %v115 = vld [vmem:[#allocation2 + $0x180] sm:$0xff]
    %v116 = vld [vmem:[#allocation2 + $0x188] sm:$0xf]
    %v117 = vld [vmem:[#allocation2 + $0x18c] sm:$0xff]
    %v118 = vld [vmem:[#allocation2 + $0x194] sm:$0xf]
    %v119 = vld [vmem:[#allocation2 + $0x198] sm:$0xff]
    %v120 = vld [vmem:[#allocation2 + $0x1a0] sm:$0xf]
    %v121 = vld [vmem:[#allocation2 + $0x1a4] sm:$0xff]
    %v122 = vld [vmem:[#allocation2 + $0x1ac] sm:$0xf]
    %v123 = vld [vmem:[#allocation2 + $0x1b0] sm:$0xff]
    %v124 = vld [vmem:[#allocation2 + $0x1b8] sm:$0xf]
    %v125 = vld [vmem:[#allocation2 + $0x1bc] sm:$0xff]
    %v126 = vld [vmem:[#allocation2 + $0x1c4] sm:$0xf]
    %v127 = vld [vmem:[#allocation2 + $0x1c8] sm:$0xff]
    %v128 = vld [vmem:[#allocation2 + $0x1d0] sm:$0xf]
    %v129 = vld [vmem:[#allocation2 + $0x1d4] sm:$0xff]
    %v130 = vld [vmem:[#allocation2 + $0x1dc] sm:$0xf]
    %v131 = vld [vmem:[#allocation2 + $0x1e0] sm:$0xff]
    %v132 = vld [vmem:[#allocation2 + $0x1e8] sm:$0xf]
    %v133 = vld [vmem:[#allocation2 + $0x1ec] sm:$0xff]
    %v134 = vld [vmem:[#allocation2 + $0x1f4] sm:$0xf]
    %v135 = vld [vmem:[#allocation2 + $0x1f8] sm:$0xff]
    %v136 = vld [vmem:[#allocation2 + $0x200] sm:$0xf]
    %v137 = vld [vmem:[#allocation2 + $0x204] sm:$0xff]
    %v138 = vld [vmem:[#allocation2 + $0x20c] sm:$0xf]
    %v139 = vld [vmem:[#allocation2 + $0x210] sm:$0xff]
    %v140 = vld [vmem:[#allocation2 + $0x218] sm:$0xf]
    %v141 = vld [vmem:[#allocation2 + $0x21c] sm:$0xff]
    %v142 = vld [vmem:[#allocation2 + $0x224] sm:$0xf]
    %v143 = vld [vmem:[#allocation2 + $0x228] sm:$0xff]
    %v144 = vld [vmem:[#allocation2 + $0x230] sm:$0xf]
    %v145 = vld [vmem:[#allocation2 + $0x234] sm:$0xff]
    %v146 = vld [vmem:[#allocation2 + $0x23c] sm:$0xf]
    %v147 = vld [vmem:[#allocation2 + $0x240] sm:$0xff]
    %v148 = vld [vmem:[#allocation2 + $0x248] sm:$0xf]
    %v149 = vld [vmem:[#allocation2 + $0x24c] sm:$0xff]
    %v150 = vld [vmem:[#allocation2 + $0x254] sm:$0xf]
    %v151 = vld [vmem:[#allocation2 + $0x258] sm:$0xff]
    %v152 = vld [vmem:[#allocation2 + $0x260] sm:$0xf]
    %v153 = vld [vmem:[#allocation2 + $0x264] sm:$0xff]
    %v154 = vld [vmem:[#allocation2 + $0x26c] sm:$0xf]
    %v155 = vld [vmem:[#allocation2 + $0x270] sm:$0xff]
    %v156 = vld [vmem:[#allocation2 + $0x278] sm:$0xf]
    %v157 = vld [vmem:[#allocation2 + $0x27c] sm:$0xff]
    %v158 = vld [vmem:[#allocation2 + $0x284] sm:$0xf]
    %v159 = vld [vmem:[#allocation2 + $0x288] sm:$0xff]
    %v160 = vld [vmem:[#allocation2 + $0x290] sm:$0xf]
    %v161 = vld [vmem:[#allocation2 + $0x294] sm:$0xff]
    %v162 = vld [vmem:[#allocation2 + $0x29c] sm:$0xf]
    %v163 = vld [vmem:[#allocation2 + $0x2a0] sm:$0xff]
    %v164 = vld [vmem:[#allocation2 + $0x2a8] sm:$0xf]
    %v165 = vld [vmem:[#allocation2 + $0x2ac] sm:$0xff]
    %v166 = vld [vmem:[#allocation2 + $0x2b4] sm:$0xf]
    %v167 = vld [vmem:[#allocation2 + $0x2b8] sm:$0xff]
    %v168 = vld [vmem:[#allocation2 + $0x2c0] sm:$0xf]
    %v169 = vld [vmem:[#allocation2 + $0x2c4] sm:$0xff]
    %v170 = vld [vmem:[#allocation2 + $0x2cc] sm:$0xf]
    %v171 = vld [vmem:[#allocation2 + $0x2d0] sm:$0xff]
    %v172 = vld [vmem:[#allocation2 + $0x2d8] sm:$0xf]
    %v173 = vld [vmem:[#allocation2 + $0x2dc] sm:$0xff]
    %v174 = vld [vmem:[#allocation2 + $0x2e4] sm:$0xf]
    %v175 = vld [vmem:[#allocation2 + $0x2e8] sm:$0xff]
    %v176 = vld [vmem:[#allocation2 + $0x2f0] sm:$0xf]
    %v177 = vld [vmem:[#allocation2 + $0x2f4] sm:$0xff]
    %v178 = vld [vmem:[#allocation2 + $0x2fc] sm:$0xf]
    %v179 = vld [vmem:[#allocation2 + $0x300] sm:$0xff]
    %v180 = vld [vmem:[#allocation2 + $0x308] sm:$0xf]
    %v181 = vld [vmem:[#allocation2 + $0x30c] sm:$0xff]
    %v182 = vld [vmem:[#allocation2 + $0x314] sm:$0xf]
    %v183 = vld [vmem:[#allocation2 + $0x318] sm:$0xff]
    %v184 = vld [vmem:[#allocation2 + $0x320] sm:$0xf]
    %v185 = vld [vmem:[#allocation2 + $0x324] sm:$0xff]
    %v186 = vld [vmem:[#allocation2 + $0x32c] sm:$0xf]
    %v187 = vld [vmem:[#allocation2 + $0x330] sm:$0xff]
    %v188 = vld [vmem:[#allocation2 + $0x338] sm:$0xf]
    %v189 = vld [vmem:[#allocation2 + $0x33c] sm:$0xff]
    %v190 = vld [vmem:[#allocation2 + $0x344] sm:$0xf]
    %v191 = vld [vmem:[#allocation2 + $0x348] sm:$0xff]
    %v192 = vld [vmem:[#allocation2 + $0x350] sm:$0xf]
    %v193 = vld [vmem:[#allocation2 + $0x354] sm:$0xff]
    %v194 = vld [vmem:[#allocation2 + $0x35c] sm:$0xf]
    %v195 = vld [vmem:[#allocation2 + $0x360] sm:$0xff]
    %v196 = vld [vmem:[#allocation2 + $0x368] sm:$0xf]
    %v197 = vld [vmem:[#allocation2 + $0x36c] sm:$0xff]
    %v198 = vld [vmem:[#allocation2 + $0x374] sm:$0xf]
    %v199 = vld [vmem:[#allocation2 + $0x378] sm:$0xff]
    %v200 = vld [vmem:[#allocation2 + $0x380] sm:$0xf]
    %v201 = vld [vmem:[#allocation2 + $0x384] sm:$0xff]
    %v202 = vld [vmem:[#allocation2 + $0x38c] sm:$0xf]
    %v203 = vld [vmem:[#allocation2 + $0x390] sm:$0xff]
    %v204 = vld [vmem:[#allocation2 + $0x398] sm:$0xf]
    %v205 = vld [vmem:[#allocation2 + $0x39c] sm:$0xff]
    %v206 = vld [vmem:[#allocation2 + $0x3a4] sm:$0xf]
    %v207 = vld [vmem:[#allocation2 + $0x3a8] sm:$0xff]
    %v208 = vld [vmem:[#allocation2 + $0x3b0] sm:$0xf]
    %v209 = vld [vmem:[#allocation2 + $0x3b4] sm:$0xff]
    %v210 = vld [vmem:[#allocation2 + $0x3bc] sm:$0xf]
    %v211 = vld [vmem:[#allocation2 + $0x3c0] sm:$0xff]
    %v212 = vld [vmem:[#allocation2 + $0x3c8] sm:$0xf]
    %v213 = vld [vmem:[#allocation2 + $0x3cc] sm:$0xff]
    %v214 = vld [vmem:[#allocation2 + $0x3d4] sm:$0xf]
    %v215 = vld [vmem:[#allocation2 + $0x3d8] sm:$0xff]
    %v216 = vld [vmem:[#allocation2 + $0x3e0] sm:$0xf]
    %v217 = vld [vmem:[#allocation2 + $0x3e4] sm:$0xff]
    %v218 = vld [vmem:[#allocation2 + $0x3ec] sm:$0xf]
    %v219 = vld [vmem:[#allocation2 + $0x3f0] sm:$0xff]
    %v220 = vld [vmem:[#allocation2 + $0x3f8] sm:$0xf]
    %v221 = vld [vmem:[#allocation2 + $0x3fc] sm:$0xff]
    %v222 = vld [vmem:[#allocation2 + $0x404] sm:$0xf]
    %v223 = vld [vmem:[#allocation2 + $0x408] sm:$0xff]
    %v224 = vld [vmem:[#allocation2 + $0x410] sm:$0xf]
    %v225 = vld [vmem:[#allocation2 + $0x414] sm:$0xff]
    %v226 = vld [vmem:[#allocation2 + $0x41c] sm:$0xf]
    %v227 = vld [vmem:[#allocation2 + $0x420] sm:$0xff]
    %v228 = vld [vmem:[#allocation2 + $0x428] sm:$0xf]
    %v229 = vld [vmem:[#allocation2 + $0x42c] sm:$0xff]
    %v230 = vld [vmem:[#allocation2 + $0x434] sm:$0xf]
    %v231 = vld [vmem:[#allocation2 + $0x438] sm:$0xff]
    %v232 = vld [vmem:[#allocation2 + $0x440] sm:$0xf]
    %v233 = vld [vmem:[#allocation2 + $0x444] sm:$0xff]
    %v234 = vld [vmem:[#allocation2 + $0x44c] sm:$0xf]
    %v235 = vld [vmem:[#allocation2 + $0x450] sm:$0xff]
    %v236 = vld [vmem:[#allocation2 + $0x458] sm:$0xf]
    %v237 = vld [vmem:[#allocation2 + $0x45c] sm:$0xff]
    %v238 = vld [vmem:[#allocation2 + $0x464] sm:$0xf]
    %v239 = vld [vmem:[#allocation2 + $0x468] sm:$0xff]
    %v240 = vld [vmem:[#allocation2 + $0x470] sm:$0xf]
    %v241 = vld [vmem:[#allocation2 + $0x474] sm:$0xff]
    %v242 = vld [vmem:[#allocation2 + $0x47c] sm:$0xf]
    %v243 = vld [vmem:[#allocation2 + $0x480] sm:$0xff]
    %v244 = vld [vmem:[#allocation2 + $0x488] sm:$0xf]
    %v245 = vld [vmem:[#allocation2 + $0x48c] sm:$0xff]
    %v246 = vld [vmem:[#allocation2 + $0x494] sm:$0xf]
    %v247 = vld [vmem:[#allocation2 + $0x498] sm:$0xff]
    %v248 = vld [vmem:[#allocation2 + $0x4a0] sm:$0xf]
    %v249 = vld [vmem:[#allocation2 + $0x4a4] sm:$0xff]
    %v250 = vld [vmem:[#allocation2 + $0x4ac] sm:$0xf]
    %v251 = vld [vmem:[#allocation2 + $0x4b0] sm:$0xff]
    %v252 = vld [vmem:[#allocation2 + $0x4b8] sm:$0xf]
    %v253 = vld [vmem:[#allocation2 + $0x4bc] sm:$0xff]
    %v254 = vld [vmem:[#allocation2 + $0x4c4] sm:$0xf]
    %v255 = vld [vmem:[#allocation2 + $0x4c8] sm:$0xff]
    %v256 = vld [vmem:[#allocation2 + $0x4d0] sm:$0xf]
    %v257 = vld [vmem:[#allocation2 + $0x4d4] sm:$0xff]
    %v258 = vld [vmem:[#allocation2 + $0x4dc] sm:$0xf]
    %v259 = vld [vmem:[#allocation2 + $0x4e0] sm:$0xff]
    %v260 = vld [vmem:[#allocation2 + $0x4e8] sm:$0xf]
    %v261 = vld [vmem:[#allocation2 + $0x4ec] sm:$0xff]
    %v262 = vld [vmem:[#allocation2 + $0x4f4] sm:$0xf]
    %v263 = vld [vmem:[#allocation2 + $0x4f8] sm:$0xff]
    %v264 = vld [vmem:[#allocation2 + $0x500] sm:$0xf]
    %v265 = vld [vmem:[#allocation2 + $0x504] sm:$0xff]
    %v266 = vld [vmem:[#allocation2 + $0x50c] sm:$0xf]
    %v267 = vld [vmem:[#allocation2 + $0x510] sm:$0xff]
    %v268 = vld [vmem:[#allocation2 + $0x518] sm:$0xf]
    %v269 = vld [vmem:[#allocation2 + $0x51c] sm:$0xff]
    %v270 = vld [vmem:[#allocation2 + $0x524] sm:$0xf]
    %v271 = vld [vmem:[#allocation2 + $0x528] sm:$0xff]
    %v272 = vld [vmem:[#allocation2 + $0x530] sm:$0xf]
    %v273 = vld [vmem:[#allocation2 + $0x534] sm:$0xff]
    %v274 = vld [vmem:[#allocation2 + $0x53c] sm:$0xf]
    %v279 = vunpack.c.l.b16 %v47
    %v280 = vunpack.c.h.b16 %v47
    %v281 = vunpack.c.l.b16 %v48
    %v282 = vunpack.c.h.b16 %v48
    %v283 = vunpack.c.l.b16 %v49
    %v284 = vunpack.c.h.b16 %v49
    %v285 = vunpack.c.l.b16 %v50
    %v286 = vpack.c.b16 %v279, %v279
    %v287 = vpack.c.b16 %v280, %v280
    %v288 = vpack.c.b16 %v281, %v281
    %v289 = vpack.c.b16 %v282, %v282
    %v290 = vpack.c.b16 %v283, %v283
    %v291 = vpack.c.b16 %v284, %v284
    %v292 = vpack.c.b16 %v285, %v285
    %v524 = vunpack.c.l.b16 %v51
    %v525 = vunpack.c.h.b16 %v51
    %v526 = vunpack.c.l.b16 %v52
    %v527 = vunpack.c.l.b16 %v53
    %v528 = vunpack.c.h.b16 %v53
    %v529 = vunpack.c.l.b16 %v54
    %v530 = vunpack.c.l.b16 %v55
    %v531 = vunpack.c.h.b16 %v55
    %v532 = vunpack.c.l.b16 %v56
    %v533 = vunpack.c.l.b16 %v57
    %v534 = vunpack.c.h.b16 %v57
    %v535 = vunpack.c.l.b16 %v58
    %v536 = vunpack.c.l.b16 %v59
    %v537 = vunpack.c.h.b16 %v59
    %v538 = vunpack.c.l.b16 %v60
    %v539 = vunpack.c.l.b16 %v61
    %v540 = vunpack.c.h.b16 %v61
    %v541 = vunpack.c.l.b16 %v62
    %v542 = vunpack.c.l.b16 %v63
    %v543 = vunpack.c.h.b16 %v63
    %v544 = vunpack.c.l.b16 %v64
    %v545 = vunpack.c.l.b16 %v65
    %v546 = vunpack.c.h.b16 %v65
    %v547 = vunpack.c.l.b16 %v66
    %v548 = vunpack.c.l.b16 %v67
    %v549 = vunpack.c.h.b16 %v67
    %v550 = vunpack.c.l.b16 %v68
    %v551 = vunpack.c.l.b16 %v69
    %v552 = vunpack.c.h.b16 %v69
    %v553 = vunpack.c.l.b16 %v70
    %v554 = vunpack.c.l.b16 %v71
    %v555 = vunpack.c.h.b16 %v71
    %v556 = vunpack.c.l.b16 %v72
    %v557 = vunpack.c.l.b16 %v73
    %v558 = vunpack.c.h.b16 %v73
    %v559 = vunpack.c.l.b16 %v74
    %v560 = vunpack.c.l.b16 %v75
    %v561 = vunpack.c.h.b16 %v75
    %v562 = vunpack.c.l.b16 %v76
    %v563 = vunpack.c.l.b16 %v77
    %v564 = vunpack.c.h.b16 %v77
    %v565 = vunpack.c.l.b16 %v78
    %v566 = vunpack.c.l.b16 %v79
    %v567 = vunpack.c.h.b16 %v79
    %v568 = vunpack.c.l.b16 %v80
    %v569 = vunpack.c.l.b16 %v81
    %v570 = vunpack.c.h.b16 %v81
    %v571 = vunpack.c.l.b16 %v82
    %v572 = vunpack.c.l.b16 %v83
    %v573 = vunpack.c.h.b16 %v83
    %v574 = vunpack.c.l.b16 %v84
    %v575 = vunpack.c.l.b16 %v85
    %v576 = vunpack.c.h.b16 %v85
    %v577 = vunpack.c.l.b16 %v86
    %v578 = vunpack.c.l.b16 %v87
    %v579 = vunpack.c.h.b16 %v87
    %v580 = vunpack.c.l.b16 %v88
    %v581 = vunpack.c.l.b16 %v89
    %v582 = vunpack.c.h.b16 %v89
    %v583 = vunpack.c.l.b16 %v90
    %v584 = vunpack.c.l.b16 %v91
    %v585 = vunpack.c.h.b16 %v91
    %v586 = vunpack.c.l.b16 %v92
    %v587 = vunpack.c.l.b16 %v93
    %v588 = vunpack.c.h.b16 %v93
    %v589 = vunpack.c.l.b16 %v94
    %v590 = vunpack.c.l.b16 %v95
    %v591 = vunpack.c.h.b16 %v95
    %v592 = vunpack.c.l.b16 %v96
    %v593 = vunpack.c.l.b16 %v97
    %v594 = vunpack.c.h.b16 %v97
    %v595 = vunpack.c.l.b16 %v98
    %v596 = vunpack.c.l.b16 %v99
    %v597 = vunpack.c.h.b16 %v99
    %v598 = vunpack.c.l.b16 %v100
    %v599 = vunpack.c.l.b16 %v101
    %v600 = vunpack.c.h.b16 %v101
    %v601 = vunpack.c.l.b16 %v102
    %v602 = vunpack.c.l.b16 %v103
    %v603 = vunpack.c.h.b16 %v103
    %v604 = vunpack.c.l.b16 %v104
    %v605 = vunpack.c.l.b16 %v105
    %v606 = vunpack.c.h.b16 %v105
    %v607 = vunpack.c.l.b16 %v106
    %v608 = vunpack.c.l.b16 %v107
    %v609 = vunpack.c.h.b16 %v107
    %v610 = vunpack.c.l.b16 %v108
    %v611 = vunpack.c.l.b16 %v109
    %v612 = vunpack.c.h.b16 %v109
    %v613 = vunpack.c.l.b16 %v110
    %v614 = vunpack.c.l.b16 %v111
    %v615 = vunpack.c.h.b16 %v111
    %v616 = vunpack.c.l.b16 %v112
    %v617 = vunpack.c.l.b16 %v113
    %v618 = vunpack.c.h.b16 %v113
    %v619 = vunpack.c.l.b16 %v114
    %v620 = vunpack.c.l.b16 %v115
    %v621 = vunpack.c.h.b16 %v115
    %v622 = vunpack.c.l.b16 %v116
    %v623 = vunpack.c.l.b16 %v117
    %v624 = vunpack.c.h.b16 %v117
    %v625 = vunpack.c.l.b16 %v118
    %v626 = vunpack.c.l.b16 %v119
    %v627 = vunpack.c.h.b16 %v119
    %v628 = vunpack.c.l.b16 %v120
    %v629 = vunpack.c.l.b16 %v121
    %v630 = vunpack.c.h.b16 %v121
    %v631 = vunpack.c.l.b16 %v122
    %v632 = vunpack.c.l.b16 %v123
    %v633 = vunpack.c.h.b16 %v123
    %v634 = vunpack.c.l.b16 %v124
    %v635 = vunpack.c.l.b16 %v125
    %v636 = vunpack.c.h.b16 %v125
    %v637 = vunpack.c.l.b16 %v126
    %v638 = vunpack.c.l.b16 %v127
    %v639 = vunpack.c.h.b16 %v127
    %v640 = vunpack.c.l.b16 %v128
    %v641 = vunpack.c.l.b16 %v129
    %v642 = vunpack.c.h.b16 %v129
    %v643 = vunpack.c.l.b16 %v130
    %v644 = vunpack.c.l.b16 %v131
    %v645 = vunpack.c.h.b16 %v131
    %v646 = vunpack.c.l.b16 %v132
    %v647 = vunpack.c.l.b16 %v133
    %v648 = vunpack.c.h.b16 %v133
    %v649 = vunpack.c.l.b16 %v134
    %v650 = vunpack.c.l.b16 %v135
    %v651 = vunpack.c.h.b16 %v135
    %v652 = vunpack.c.l.b16 %v136
    %v653 = vunpack.c.l.b16 %v137
    %v654 = vunpack.c.h.b16 %v137
    %v655 = vunpack.c.l.b16 %v138
    %v656 = vunpack.c.l.b16 %v139
    %v657 = vunpack.c.h.b16 %v139
    %v658 = vunpack.c.l.b16 %v140
    %v659 = vunpack.c.l.b16 %v141
    %v660 = vunpack.c.h.b16 %v141
    %v661 = vunpack.c.l.b16 %v142
    %v662 = vunpack.c.l.b16 %v143
    %v663 = vunpack.c.h.b16 %v143
    %v664 = vunpack.c.l.b16 %v144
    %v665 = vunpack.c.l.b16 %v145
    %v666 = vunpack.c.h.b16 %v145
    %v667 = vunpack.c.l.b16 %v146
    %v668 = vunpack.c.l.b16 %v147
    %v669 = vunpack.c.h.b16 %v147
    %v670 = vunpack.c.l.b16 %v148
    %v671 = vunpack.c.l.b16 %v149
    %v672 = vunpack.c.h.b16 %v149
    %v673 = vunpack.c.l.b16 %v150
    %v674 = vunpack.c.l.b16 %v151
    %v675 = vunpack.c.h.b16 %v151
    %v676 = vunpack.c.l.b16 %v152
    %v677 = vunpack.c.l.b16 %v153
    %v678 = vunpack.c.h.b16 %v153
    %v679 = vunpack.c.l.b16 %v154
    %v680 = vunpack.c.l.b16 %v155
    %v681 = vunpack.c.h.b16 %v155
    %v682 = vunpack.c.l.b16 %v156
    %v683 = vunpack.c.l.b16 %v157
    %v684 = vunpack.c.h.b16 %v157
    %v685 = vunpack.c.l.b16 %v158
    %v686 = vunpack.c.l.b16 %v159
    %v687 = vunpack.c.h.b16 %v159
    %v688 = vunpack.c.l.b16 %v160
    %v689 = vunpack.c.l.b16 %v161
    %v690 = vunpack.c.h.b16 %v161
    %v691 = vunpack.c.l.b16 %v162
    %v692 = vunpack.c.l.b16 %v163
    %v693 = vunpack.c.h.b16 %v163
    %v694 = vunpack.c.l.b16 %v164
    %v695 = vunpack.c.l.b16 %v165
    %v696 = vunpack.c.h.b16 %v165
    %v697 = vunpack.c.l.b16 %v166
    %v698 = vunpack.c.l.b16 %v167
    %v699 = vunpack.c.h.b16 %v167
    %v700 = vunpack.c.l.b16 %v168
    %v701 = vunpack.c.l.b16 %v169
    %v702 = vunpack.c.h.b16 %v169
    %v703 = vunpack.c.l.b16 %v170
    %v704 = vunpack.c.l.b16 %v171
    %v705 = vunpack.c.h.b16 %v171
    %v706 = vunpack.c.l.b16 %v172
    %v707 = vunpack.c.l.b16 %v173
    %v708 = vunpack.c.h.b16 %v173
    %v709 = vunpack.c.l.b16 %v174
    %v710 = vunpack.c.l.b16 %v175
    %v711 = vunpack.c.h.b16 %v175
    %v712 = vunpack.c.l.b16 %v176
    %v713 = vunpack.c.l.b16 %v177
    %v714 = vunpack.c.h.b16 %v177
    %v715 = vunpack.c.l.b16 %v178
    %v716 = vunpack.c.l.b16 %v179
    %v717 = vunpack.c.h.b16 %v179
    %v718 = vunpack.c.l.b16 %v180
    %v719 = vunpack.c.l.b16 %v181
    %v720 = vunpack.c.h.b16 %v181
    %v721 = vunpack.c.l.b16 %v182
    %v722 = vunpack.c.l.b16 %v183
    %v723 = vunpack.c.h.b16 %v183
    %v724 = vunpack.c.l.b16 %v184
    %v725 = vunpack.c.l.b16 %v185
    %v726 = vunpack.c.h.b16 %v185
    %v727 = vunpack.c.l.b16 %v186
    %v728 = vunpack.c.l.b16 %v187
    %v729 = vunpack.c.h.b16 %v187
    %v730 = vunpack.c.l.b16 %v188
    %v731 = vunpack.c.l.b16 %v189
    %v732 = vunpack.c.h.b16 %v189
    %v733 = vunpack.c.l.b16 %v190
    %v734 = vunpack.c.l.b16 %v191
    %v735 = vunpack.c.h.b16 %v191
    %v736 = vunpack.c.l.b16 %v192
    %v737 = vunpack.c.l.b16 %v193
    %v738 = vunpack.c.h.b16 %v193
    %v739 = vunpack.c.l.b16 %v194
    %v740 = vunpack.c.l.b16 %v195
    %v741 = vunpack.c.h.b16 %v195
    %v742 = vunpack.c.l.b16 %v196
    %v743 = vunpack.c.l.b16 %v197
    %v744 = vunpack.c.h.b16 %v197
    %v745 = vunpack.c.l.b16 %v198
    %v746 = vunpack.c.l.b16 %v199
    %v747 = vunpack.c.h.b16 %v199
    %v748 = vunpack.c.l.b16 %v200
    %v749 = vunpack.c.l.b16 %v201
    %v750 = vunpack.c.h.b16 %v201
    %v751 = vunpack.c.l.b16 %v202
    %v752 = vunpack.c.l.b16 %v203
    %v753 = vunpack.c.h.b16 %v203
    %v754 = vunpack.c.l.b16 %v204
    %v755 = vunpack.c.l.b16 %v205
    %v756 = vunpack.c.h.b16 %v205
    %v757 = vunpack.c.l.b16 %v206
    %v758 = vunpack.c.l.b16 %v207
    %v759 = vunpack.c.h.b16 %v207
    %v760 = vunpack.c.l.b16 %v208
    %v761 = vunpack.c.l.b16 %v209
    %v762 = vunpack.c.h.b16 %v209
    %v763 = vunpack.c.l.b16 %v210
    %v764 = vunpack.c.l.b16 %v211
    %v765 = vunpack.c.h.b16 %v211
    %v766 = vunpack.c.l.b16 %v212
    %v767 = vunpack.c.l.b16 %v213
    %v768 = vunpack.c.h.b16 %v213
    %v769 = vunpack.c.l.b16 %v214
    %v770 = vunpack.c.l.b16 %v215
    %v771 = vunpack.c.h.b16 %v215
    %v772 = vunpack.c.l.b16 %v216
    %v773 = vunpack.c.l.b16 %v217
    %v774 = vunpack.c.h.b16 %v217
    %v775 = vunpack.c.l.b16 %v218
    %v776 = vunpack.c.l.b16 %v219
    %v777 = vunpack.c.h.b16 %v219
    %v778 = vunpack.c.l.b16 %v220
    %v779 = vunpack.c.l.b16 %v221
    %v780 = vunpack.c.h.b16 %v221
    %v781 = vunpack.c.l.b16 %v222
    %v782 = vunpack.c.l.b16 %v223
    %v783 = vunpack.c.h.b16 %v223
    %v784 = vunpack.c.l.b16 %v224
    %v785 = vunpack.c.l.b16 %v225
    %v786 = vunpack.c.h.b16 %v225
    %v787 = vunpack.c.l.b16 %v226
    %v788 = vunpack.c.l.b16 %v227
    %v789 = vunpack.c.h.b16 %v227
    %v790 = vunpack.c.l.b16 %v228
    %v791 = vunpack.c.l.b16 %v229
    %v792 = vunpack.c.h.b16 %v229
    %v793 = vunpack.c.l.b16 %v230
    %v794 = vunpack.c.l.b16 %v231
    %v795 = vunpack.c.h.b16 %v231
    %v796 = vunpack.c.l.b16 %v232
    %v797 = vunpack.c.l.b16 %v233
    %v798 = vunpack.c.h.b16 %v233
    %v799 = vunpack.c.l.b16 %v234
    %v800 = vunpack.c.l.b16 %v235
    %v801 = vunpack.c.h.b16 %v235
    %v802 = vunpack.c.l.b16 %v236
    %v803 = vunpack.c.l.b16 %v237
    %v804 = vunpack.c.h.b16 %v237
    %v805 = vunpack.c.l.b16 %v238
    %v806 = vunpack.c.l.b16 %v239
    %v807 = vunpack.c.h.b16 %v239
    %v808 = vunpack.c.l.b16 %v240
    %v809 = vunpack.c.l.b16 %v241
    %v810 = vunpack.c.h.b16 %v241
    %v811 = vunpack.c.l.b16 %v242
    %v812 = vunpack.c.l.b16 %v243
    %v813 = vunpack.c.h.b16 %v243
    %v814 = vunpack.c.l.b16 %v244
    %v815 = vunpack.c.l.b16 %v245
    %v816 = vunpack.c.h.b16 %v245
    %v817 = vunpack.c.l.b16 %v246
    %v818 = vunpack.c.l.b16 %v247
    %v819 = vunpack.c.h.b16 %v247
    %v820 = vunpack.c.l.b16 %v248
    %v821 = vunpack.c.l.b16 %v249
    %v822 = vunpack.c.h.b16 %v249
    %v823 = vunpack.c.l.b16 %v250
    %v824 = vunpack.c.l.b16 %v251
    %v825 = vunpack.c.h.b16 %v251
    %v826 = vunpack.c.l.b16 %v252
    %v827 = vunpack.c.l.b16 %v253
    %v828 = vunpack.c.h.b16 %v253
    %v829 = vunpack.c.l.b16 %v254
    %v830 = vunpack.c.l.b16 %v255
    %v831 = vunpack.c.h.b16 %v255
    %v832 = vunpack.c.l.b16 %v256
    %v833 = vunpack.c.l.b16 %v257
    %v834 = vunpack.c.h.b16 %v257
    %v835 = vunpack.c.l.b16 %v258
    %v836 = vunpack.c.l.b16 %v259
    %v837 = vunpack.c.h.b16 %v259
    %v838 = vunpack.c.l.b16 %v260
    %v839 = vunpack.c.l.b16 %v261
    %v840 = vunpack.c.h.b16 %v261
    %v841 = vunpack.c.l.b16 %v262
    %v842 = vunpack.c.l.b16 %v263
    %v843 = vunpack.c.h.b16 %v263
    %v844 = vunpack.c.l.b16 %v264
    %v845 = vunpack.c.l.b16 %v265
    %v846 = vunpack.c.h.b16 %v265
    %v847 = vunpack.c.l.b16 %v266
    %v848 = vunpack.c.l.b16 %v267
    %v849 = vunpack.c.h.b16 %v267
    %v850 = vunpack.c.l.b16 %v268
    %v851 = vunpack.c.l.b16 %v269
    %v852 = vunpack.c.h.b16 %v269
    %v853 = vunpack.c.l.b16 %v270
    %v854 = vunpack.c.l.b16 %v271
    %v855 = vunpack.c.h.b16 %v271
    %v856 = vunpack.c.l.b16 %v272
    %v857 = vunpack.c.l.b16 %v273
    %v858 = vunpack.c.h.b16 %v273
    %v859 = vunpack.c.l.b16 %v274
    %v860 = vpack.c.b16 %v527, %v524
    %v861 = vpack.c.b16 %v528, %v525
    %v862 = vpack.c.b16 %v529, %v526
    %v863 = vpack.c.b16 %v533, %v530
    %v864 = vpack.c.b16 %v534, %v531
    %v865 = vpack.c.b16 %v535, %v532
    %v866 = vpack.c.b16 %v539, %v536
    %v867 = vpack.c.b16 %v540, %v537
    %v868 = vpack.c.b16 %v541, %v538
    %v869 = vpack.c.b16 %v545, %v542
    %v870 = vpack.c.b16 %v546, %v543
    %v871 = vpack.c.b16 %v547, %v544
    %v872 = vpack.c.b16 %v551, %v548
    %v873 = vpack.c.b16 %v552, %v549
    %v874 = vpack.c.b16 %v553, %v550
    %v875 = vpack.c.b16 %v557, %v554
    %v876 = vpack.c.b16 %v558, %v555
    %v877 = vpack.c.b16 %v559, %v556
    %v878 = vpack.c.b16 %v563, %v560
    %v879 = vpack.c.b16 %v564, %v561
    %v880 = vpack.c.b16 %v565, %v562
    %v881 = vpack.c.b16 %v569, %v566
    %v882 = vpack.c.b16 %v570, %v567
    %v883 = vpack.c.b16 %v571, %v568
    %v884 = vpack.c.b16 %v575, %v572
    %v885 = vpack.c.b16 %v576, %v573
    %v886 = vpack.c.b16 %v577, %v574
    %v887 = vpack.c.b16 %v581, %v578
    %v888 = vpack.c.b16 %v582, %v579
    %v889 = vpack.c.b16 %v583, %v580
    %v890 = vpack.c.b16 %v587, %v584
    %v891 = vpack.c.b16 %v588, %v585
    %v892 = vpack.c.b16 %v589, %v586
    %v893 = vpack.c.b16 %v593, %v590
    %v894 = vpack.c.b16 %v594, %v591
    %v895 = vpack.c.b16 %v595, %v592
    %v896 = vpack.c.b16 %v599, %v596
    %v897 = vpack.c.b16 %v600, %v597
    %v898 = vpack.c.b16 %v601, %v598
    %v899 = vpack.c.b16 %v605, %v602
    %v900 = vpack.c.b16 %v606, %v603
    %v901 = vpack.c.b16 %v607, %v604
    %v902 = vpack.c.b16 %v611, %v608
    %v903 = vpack.c.b16 %v612, %v609
    %v904 = vpack.c.b16 %v613, %v610
    %v905 = vpack.c.b16 %v617, %v614
    %v906 = vpack.c.b16 %v618, %v615
    %v907 = vpack.c.b16 %v619, %v616
    %v908 = vpack.c.b16 %v623, %v620
    %v909 = vpack.c.b16 %v624, %v621
    %v910 = vpack.c.b16 %v625, %v622
    %v911 = vpack.c.b16 %v629, %v626
    %v912 = vpack.c.b16 %v630, %v627
    %v913 = vpack.c.b16 %v631, %v628
    %v914 = vpack.c.b16 %v635, %v632
    %v915 = vpack.c.b16 %v636, %v633
    %v916 = vpack.c.b16 %v637, %v634
    %v917 = vpack.c.b16 %v641, %v638
    %v918 = vpack.c.b16 %v642, %v639
    %v919 = vpack.c.b16 %v643, %v640
    %v920 = vpack.c.b16 %v647, %v644
    %v921 = vpack.c.b16 %v648, %v645
    %v922 = vpack.c.b16 %v649, %v646
    %v923 = vpack.c.b16 %v653, %v650
    %v924 = vpack.c.b16 %v654, %v651
    %v925 = vpack.c.b16 %v655, %v652
    %v926 = vpack.c.b16 %v659, %v656
    %v927 = vpack.c.b16 %v660, %v657
    %v928 = vpack.c.b16 %v661, %v658
    %v929 = vpack.c.b16 %v665, %v662
    %v930 = vpack.c.b16 %v666, %v663
    %v931 = vpack.c.b16 %v667, %v664
    %v932 = vpack.c.b16 %v671, %v668
    %v933 = vpack.c.b16 %v672, %v669
    %v934 = vpack.c.b16 %v673, %v670
    %v935 = vpack.c.b16 %v677, %v674
    %v936 = vpack.c.b16 %v678, %v675
    %v937 = vpack.c.b16 %v679, %v676
    %v938 = vpack.c.b16 %v683, %v680
    %v939 = vpack.c.b16 %v684, %v681
    %v940 = vpack.c.b16 %v685, %v682
    %v941 = vpack.c.b16 %v689, %v686
    %v942 = vpack.c.b16 %v690, %v687
    %v943 = vpack.c.b16 %v691, %v688
    %v944 = vpack.c.b16 %v695, %v692
    %v945 = vpack.c.b16 %v696, %v693
    %v946 = vpack.c.b16 %v697, %v694
    %v947 = vpack.c.b16 %v701, %v698
    %v948 = vpack.c.b16 %v702, %v699
    %v949 = vpack.c.b16 %v703, %v700
    %v950 = vpack.c.b16 %v707, %v704
    %v951 = vpack.c.b16 %v708, %v705
    %v952 = vpack.c.b16 %v709, %v706
    %v953 = vpack.c.b16 %v713, %v710
    %v954 = vpack.c.b16 %v714, %v711
    %v955 = vpack.c.b16 %v715, %v712
    %v956 = vpack.c.b16 %v719, %v716
    %v957 = vpack.c.b16 %v720, %v717
    %v958 = vpack.c.b16 %v721, %v718
    %v959 = vpack.c.b16 %v725, %v722
    %v960 = vpack.c.b16 %v726, %v723
    %v961 = vpack.c.b16 %v727, %v724
    %v962 = vpack.c.b16 %v731, %v728
    %v963 = vpack.c.b16 %v732, %v729
    %v964 = vpack.c.b16 %v733, %v730
    %v965 = vpack.c.b16 %v737, %v734
    %v966 = vpack.c.b16 %v738, %v735
    %v967 = vpack.c.b16 %v739, %v736
    %v968 = vpack.c.b16 %v743, %v740
    %v969 = vpack.c.b16 %v744, %v741
    %v970 = vpack.c.b16 %v745, %v742
    %v971 = vpack.c.b16 %v749, %v746
    %v972 = vpack.c.b16 %v750, %v747
    %v973 = vpack.c.b16 %v751, %v748
    %v974 = vpack.c.b16 %v755, %v752
    %v975 = vpack.c.b16 %v756, %v753
    %v976 = vpack.c.b16 %v757, %v754
    %v977 = vpack.c.b16 %v761, %v758
    %v978 = vpack.c.b16 %v762, %v759
    %v979 = vpack.c.b16 %v763, %v760
    %v980 = vpack.c.b16 %v767, %v764
    %v981 = vpack.c.b16 %v768, %v765
    %v982 = vpack.c.b16 %v769, %v766
    %v983 = vpack.c.b16 %v773, %v770
    %v984 = vpack.c.b16 %v774, %v771
    %v985 = vpack.c.b16 %v775, %v772
    %v986 = vpack.c.b16 %v779, %v776
    %v987 = vpack.c.b16 %v780, %v777
    %v988 = vpack.c.b16 %v781, %v778
    %v989 = vpack.c.b16 %v785, %v782
    %v990 = vpack.c.b16 %v786, %v783
    %v991 = vpack.c.b16 %v787, %v784
    %v992 = vpack.c.b16 %v791, %v788
    %v993 = vpack.c.b16 %v792, %v789
    %v994 = vpack.c.b16 %v793, %v790
    %v995 = vpack.c.b16 %v797, %v794
    %v996 = vpack.c.b16 %v798, %v795
    %v997 = vpack.c.b16 %v799, %v796
    %v998 = vpack.c.b16 %v803, %v800
    %v999 = vpack.c.b16 %v804, %v801
    %v1000 = vpack.c.b16 %v805, %v802
    %v1001 = vpack.c.b16 %v809, %v806
    %v1002 = vpack.c.b16 %v810, %v807
    %v1003 = vpack.c.b16 %v811, %v808
    %v1004 = vpack.c.b16 %v815, %v812
    %v1005 = vpack.c.b16 %v816, %v813
    %v1006 = vpack.c.b16 %v817, %v814
    %v1007 = vpack.c.b16 %v821, %v818
    %v1008 = vpack.c.b16 %v822, %v819
    %v1009 = vpack.c.b16 %v823, %v820
    %v1010 = vpack.c.b16 %v827, %v824
    %v1011 = vpack.c.b16 %v828, %v825
    %v1012 = vpack.c.b16 %v829, %v826
    %v1013 = vpack.c.b16 %v833, %v830
    %v1014 = vpack.c.b16 %v834, %v831
    %v1015 = vpack.c.b16 %v835, %v832
    %v1016 = vpack.c.b16 %v839, %v836
    %v1017 = vpack.c.b16 %v840, %v837
    %v1018 = vpack.c.b16 %v841, %v838
    %v1019 = vpack.c.b16 %v845, %v842
    %v1020 = vpack.c.b16 %v846, %v843
    %v1021 = vpack.c.b16 %v847, %v844
    %v1022 = vpack.c.b16 %v851, %v848
    %v1023 = vpack.c.b16 %v852, %v849
    %v1024 = vpack.c.b16 %v853, %v850
    %v1025 = vpack.c.b16 %v857, %v854
    %v1026 = vpack.c.b16 %v858, %v855
    %v1027 = vpack.c.b16 %v859, %v856
    %1196 = vmatpush.bf16.msra.mxu0 %v881
    %1197 = vmatpush.bf16.msra.mxu0 %v878
    %1198 = vmatpush.bf16.msra.mxu0 %v875
    %1199 = vmatpush.bf16.msra.mxu0 %v872
    %1200 = vmatpush.bf16.msra.mxu0 %v869
    %1201 = vmatpush.bf16.msra.mxu0 %v866
    %1202 = vmatpush.bf16.msra.mxu0 %v863
    %1203 = vmatpush.bf16.msra.mxu0 %v860
    %1204 = vmatmul.bf16.gmra.mxu0 %v286
    %v1205 = vpop.f32.mrf.mxu0
    %v1206 = vadd.f32 0.0, %v1205
    %v1207 = vpop.f32.mrf.mxu0
    %1208 = vdwg.mxu0
    %1209 = vmatpush.bf16.msra.mxu0 %v905
    %1210 = vmatpush.bf16.msra.mxu0 %v902
    %1211 = vmatpush.bf16.msra.mxu0 %v899
    %1212 = vmatpush.bf16.msra.mxu0 %v896
    %1213 = vmatpush.bf16.msra.mxu0 %v893
    %1214 = vmatpush.bf16.msra.mxu0 %v890
    %1215 = vmatpush.bf16.msra.mxu0 %v887
    %1216 = vmatpush.bf16.msra.mxu0 %v884
    %1217 = vmatmul.bf16.gmra.mxu0 %v287
    %v1218 = vpop.f32.mrf.mxu0
    %v1219 = vadd.f32 %v1206, %v1218
    %v1220 = vpop.f32.mrf.mxu0
    %1221 = vdwg.mxu0
    %1222 = vmatpush.bf16.msra.mxu0 %v929
    %1223 = vmatpush.bf16.msra.mxu0 %v926
    %1224 = vmatpush.bf16.msra.mxu0 %v923
    %1225 = vmatpush.bf16.msra.mxu0 %v920
    %1226 = vmatpush.bf16.msra.mxu0 %v917
    %1227 = vmatpush.bf16.msra.mxu0 %v914
    %1228 = vmatpush.bf16.msra.mxu0 %v911
    %1229 = vmatpush.bf16.msra.mxu0 %v908
    %1230 = vmatmul.bf16.gmra.mxu0 %v288
    %v1231 = vpop.f32.mrf.mxu0
    %v1232 = vadd.f32 %v1219, %v1231
    %v1233 = vpop.f32.mrf.mxu0
    %1234 = vdwg.mxu0
    %1235 = vmatpush.bf16.msra.mxu0 %v953
    %1236 = vmatpush.bf16.msra.mxu0 %v950
    %1237 = vmatpush.bf16.msra.mxu0 %v947
    %1238 = vmatpush.bf16.msra.mxu0 %v944
    %1239 = vmatpush.bf16.msra.mxu0 %v941
    %1240 = vmatpush.bf16.msra.mxu0 %v938
    %1241 = vmatpush.bf16.msra.mxu0 %v935
    %1242 = vmatpush.bf16.msra.mxu0 %v932
    %1243 = vmatmul.bf16.gmra.mxu0 %v289
    %v1244 = vpop.f32.mrf.mxu0
    %v1245 = vadd.f32 %v1232, %v1244
    %v1246 = vpop.f32.mrf.mxu0
    %1247 = vdwg.mxu0
    %1248 = vmatpush.bf16.msra.mxu0 %v977
    %1249 = vmatpush.bf16.msra.mxu0 %v974
    %1250 = vmatpush.bf16.msra.mxu0 %v971
    %1251 = vmatpush.bf16.msra.mxu0 %v968
    %1252 = vmatpush.bf16.msra.mxu0 %v965
    %1253 = vmatpush.bf16.msra.mxu0 %v962
    %1254 = vmatpush.bf16.msra.mxu0 %v959
    %1255 = vmatpush.bf16.msra.mxu0 %v956
    %1256 = vmatmul.bf16.gmra.mxu0 %v290
    %v1257 = vpop.f32.mrf.mxu0
    %v1258 = vadd.f32 %v1245, %v1257
    %v1259 = vpop.f32.mrf.mxu0
    %1260 = vdwg.mxu0
    %1261 = vmatpush.bf16.msra.mxu0 %v1001
    %1262 = vmatpush.bf16.msra.mxu0 %v998
    %1263 = vmatpush.bf16.msra.mxu0 %v995
    %1264 = vmatpush.bf16.msra.mxu0 %v992
    %1265 = vmatpush.bf16.msra.mxu0 %v989
    %1266 = vmatpush.bf16.msra.mxu0 %v986
    %1267 = vmatpush.bf16.msra.mxu0 %v983
    %1268 = vmatpush.bf16.msra.mxu0 %v980
    %1269 = vmatmul.bf16.gmra.mxu0 %v291
    %v1270 = vpop.f32.mrf.mxu0
    %v1271 = vadd.f32 %v1258, %v1270
    %v1272 = vpop.f32.mrf.mxu0
    %1273 = vdwg.mxu0
    %1274 = vmatpush.bf16.msra.mxu0 %v1025
    %1275 = vmatpush.bf16.msra.mxu0 %v1022
    %1276 = vmatpush.bf16.msra.mxu0 %v1019
    %1277 = vmatpush.bf16.msra.mxu0 %v1016
    %1278 = vmatpush.bf16.msra.mxu0 %v1013
    %1279 = vmatpush.bf16.msra.mxu0 %v1010
    %1280 = vmatpush.bf16.msra.mxu0 %v1007
    %1281 = vmatpush.bf16.msra.mxu0 %v1004
    %1282 = vmatmul.bf16.gmra.mxu0 %v292
    %v1283 = vpop.f32.mrf.mxu0
    %v1284 = vadd.f32 %v1271, %v1283
    %v1285 = vpop.f32.mrf.mxu0
    %1286 = vdwg.mxu0
    %1287 = vmatpush.bf16.msra.mxu0 %v882
    %1288 = vmatpush.bf16.msra.mxu0 %v879
    %1289 = vmatpush.bf16.msra.mxu0 %v876
    %1290 = vmatpush.bf16.msra.mxu0 %v873
    %1291 = vmatpush.bf16.msra.mxu0 %v870
    %1292 = vmatpush.bf16.msra.mxu0 %v867
    %1293 = vmatpush.bf16.msra.mxu0 %v864
    %1294 = vmatpush.bf16.msra.mxu0 %v861
    %1295 = vmatmul.bf16.gmra.mxu0 %v286
    %v1296 = vpop.f32.mrf.mxu0
    %v1297 = vadd.f32 0.0, %v1296
    %v1298 = vpop.f32.mrf.mxu0
    %1299 = vdwg.mxu0
    %1300 = vmatpush.bf16.msra.mxu0 %v906
    %1301 = vmatpush.bf16.msra.mxu0 %v903
    %1302 = vmatpush.bf16.msra.mxu0 %v900
    %1303 = vmatpush.bf16.msra.mxu0 %v897
    %1304 = vmatpush.bf16.msra.mxu0 %v894
    %1305 = vmatpush.bf16.msra.mxu0 %v891
    %1306 = vmatpush.bf16.msra.mxu0 %v888
    %1307 = vmatpush.bf16.msra.mxu0 %v885
    %1308 = vmatmul.bf16.gmra.mxu0 %v287
    %v1309 = vpop.f32.mrf.mxu0
    %v1310 = vadd.f32 %v1297, %v1309
    %v1311 = vpop.f32.mrf.mxu0
    %1312 = vdwg.mxu0
    %1313 = vmatpush.bf16.msra.mxu0 %v930
    %1314 = vmatpush.bf16.msra.mxu0 %v927
    %1315 = vmatpush.bf16.msra.mxu0 %v924
    %1316 = vmatpush.bf16.msra.mxu0 %v921
    %1317 = vmatpush.bf16.msra.mxu0 %v918
    %1318 = vmatpush.bf16.msra.mxu0 %v915
    %1319 = vmatpush.bf16.msra.mxu0 %v912
    %1320 = vmatpush.bf16.msra.mxu0 %v909
    %1321 = vmatmul.bf16.gmra.mxu0 %v288
    %v1322 = vpop.f32.mrf.mxu0
    %v1323 = vadd.f32 %v1310, %v1322
    %v1324 = vpop.f32.mrf.mxu0
    %1325 = vdwg.mxu0
    %1326 = vmatpush.bf16.msra.mxu0 %v954
    %1327 = vmatpush.bf16.msra.mxu0 %v951
    %1328 = vmatpush.bf16.msra.mxu0 %v948
    %1329 = vmatpush.bf16.msra.mxu0 %v945
    %1330 = vmatpush.bf16.msra.mxu0 %v942
    %1331 = vmatpush.bf16.msra.mxu0 %v939
    %1332 = vmatpush.bf16.msra.mxu0 %v936
    %1333 = vmatpush.bf16.msra.mxu0 %v933
    %1334 = vmatmul.bf16.gmra.mxu0 %v289
    %v1335 = vpop.f32.mrf.mxu0
    %v1336 = vadd.f32 %v1323, %v1335
    %v1337 = vpop.f32.mrf.mxu0
    %1338 = vdwg.mxu0
    %1339 = vmatpush.bf16.msra.mxu0 %v978
    %1340 = vmatpush.bf16.msra.mxu0 %v975
    %1341 = vmatpush.bf16.msra.mxu0 %v972
    %1342 = vmatpush.bf16.msra.mxu0 %v969
    %1343 = vmatpush.bf16.msra.mxu0 %v966
    %1344 = vmatpush.bf16.msra.mxu0 %v963
    %1345 = vmatpush.bf16.msra.mxu0 %v960
    %1346 = vmatpush.bf16.msra.mxu0 %v957
    %1347 = vmatmul.bf16.gmra.mxu0 %v290
    %v1348 = vpop.f32.mrf.mxu0
    %v1349 = vadd.f32 %v1336, %v1348
    %v1350 = vpop.f32.mrf.mxu0
    %1351 = vdwg.mxu0
    %1352 = vmatpush.bf16.msra.mxu0 %v1002
    %1353 = vmatpush.bf16.msra.mxu0 %v999
    %1354 = vmatpush.bf16.msra.mxu0 %v996
    %1355 = vmatpush.bf16.msra.mxu0 %v993
    %1356 = vmatpush.bf16.msra.mxu0 %v990
    %1357 = vmatpush.bf16.msra.mxu0 %v987
    %1358 = vmatpush.bf16.msra.mxu0 %v984
    %1359 = vmatpush.bf16.msra.mxu0 %v981
    %1360 = vmatmul.bf16.gmra.mxu0 %v291
    %v1361 = vpop.f32.mrf.mxu0
    %v1362 = vadd.f32 %v1349, %v1361
    %v1363 = vpop.f32.mrf.mxu0
    %1364 = vdwg.mxu0
    %1365 = vmatpush.bf16.msra.mxu0 %v1026
    %1366 = vmatpush.bf16.msra.mxu0 %v1023
    %1367 = vmatpush.bf16.msra.mxu0 %v1020
    %1368 = vmatpush.bf16.msra.mxu0 %v1017
    %1369 = vmatpush.bf16.msra.mxu0 %v1014
    %1370 = vmatpush.bf16.msra.mxu0 %v1011
    %1371 = vmatpush.bf16.msra.mxu0 %v1008
    %1372 = vmatpush.bf16.msra.mxu0 %v1005
    %1373 = vmatmul.bf16.gmra.mxu0 %v292
    %v1374 = vpop.f32.mrf.mxu0
    %v1375 = vadd.f32 %v1362, %v1374
    %v1376 = vpop.f32.mrf.mxu0
    %1377 = vdwg.mxu0
    %1378 = vmatpush.bf16.msra.mxu0 %v883
    %1379 = vmatpush.bf16.msra.mxu0 %v880
    %1380 = vmatpush.bf16.msra.mxu0 %v877
    %1381 = vmatpush.bf16.msra.mxu0 %v874
    %1382 = vmatpush.bf16.msra.mxu0 %v871
    %1383 = vmatpush.bf16.msra.mxu0 %v868
    %1384 = vmatpush.bf16.msra.mxu0 %v865
    %1385 = vmatpush.bf16.msra.mxu0 %v862
    %1386 = vmatmul.bf16.gmra.mxu0 %v286
    %v1387 = vpop.f32.mrf.mxu0
    %v1388 = vadd.f32 0.0, %v1387
    %v1389 = vpop.f32.mrf.mxu0
    %1390 = vdwg.mxu0
    %1391 = vmatpush.bf16.msra.mxu0 %v907
    %1392 = vmatpush.bf16.msra.mxu0 %v904
    %1393 = vmatpush.bf16.msra.mxu0 %v901
    %1394 = vmatpush.bf16.msra.mxu0 %v898
    %1395 = vmatpush.bf16.msra.mxu0 %v895
    %1396 = vmatpush.bf16.msra.mxu0 %v892
    %1397 = vmatpush.bf16.msra.mxu0 %v889
    %1398 = vmatpush.bf16.msra.mxu0 %v886
    %1399 = vmatmul.bf16.gmra.mxu0 %v287
    %v1400 = vpop.f32.mrf.mxu0
    %v1401 = vadd.f32 %v1388, %v1400
    %v1402 = vpop.f32.mrf.mxu0
    %1403 = vdwg.mxu0
    %1404 = vmatpush.bf16.msra.mxu0 %v931
    %1405 = vmatpush.bf16.msra.mxu0 %v928
    %1406 = vmatpush.bf16.msra.mxu0 %v925
    %1407 = vmatpush.bf16.msra.mxu0 %v922
    %1408 = vmatpush.bf16.msra.mxu0 %v919
    %1409 = vmatpush.bf16.msra.mxu0 %v916
    %1410 = vmatpush.bf16.msra.mxu0 %v913
    %1411 = vmatpush.bf16.msra.mxu0 %v910
    %1412 = vmatmul.bf16.gmra.mxu0 %v288
    %v1413 = vpop.f32.mrf.mxu0
    %v1414 = vadd.f32 %v1401, %v1413
    %v1415 = vpop.f32.mrf.mxu0
    %1416 = vdwg.mxu0
    %1417 = vmatpush.bf16.msra.mxu0 %v955
    %1418 = vmatpush.bf16.msra.mxu0 %v952
    %1419 = vmatpush.bf16.msra.mxu0 %v949
    %1420 = vmatpush.bf16.msra.mxu0 %v946
    %1421 = vmatpush.bf16.msra.mxu0 %v943
    %1422 = vmatpush.bf16.msra.mxu0 %v940
    %1423 = vmatpush.bf16.msra.mxu0 %v937
    %1424 = vmatpush.bf16.msra.mxu0 %v934
    %1425 = vmatmul.bf16.gmra.mxu0 %v289
    %v1426 = vpop.f32.mrf.mxu0
    %v1427 = vadd.f32 %v1414, %v1426
    %v1428 = vpop.f32.mrf.mxu0
    %1429 = vdwg.mxu0
    %1430 = vmatpush.bf16.msra.mxu0 %v979
    %1431 = vmatpush.bf16.msra.mxu0 %v976
    %1432 = vmatpush.bf16.msra.mxu0 %v973
    %1433 = vmatpush.bf16.msra.mxu0 %v970
    %1434 = vmatpush.bf16.msra.mxu0 %v967
    %1435 = vmatpush.bf16.msra.mxu0 %v964
    %1436 = vmatpush.bf16.msra.mxu0 %v961
    %1437 = vmatpush.bf16.msra.mxu0 %v958
    %1438 = vmatmul.bf16.gmra.mxu0 %v290
    %v1439 = vpop.f32.mrf.mxu0
    %v1440 = vadd.f32 %v1427, %v1439
    %v1441 = vpop.f32.mrf.mxu0
    %1442 = vdwg.mxu0
    %1443 = vmatpush.bf16.msra.mxu0 %v1003
    %1444 = vmatpush.bf16.msra.mxu0 %v1000
    %1445 = vmatpush.bf16.msra.mxu0 %v997
    %1446 = vmatpush.bf16.msra.mxu0 %v994
    %1447 = vmatpush.bf16.msra.mxu0 %v991
    %1448 = vmatpush.bf16.msra.mxu0 %v988
    %1449 = vmatpush.bf16.msra.mxu0 %v985
    %1450 = vmatpush.bf16.msra.mxu0 %v982
    %1451 = vmatmul.bf16.gmra.mxu0 %v291
    %v1452 = vpop.f32.mrf.mxu0
    %v1453 = vadd.f32 %v1440, %v1452
    %v1454 = vpop.f32.mrf.mxu0
    %1455 = vdwg.mxu0
    %1456 = vmatpush.bf16.msra.mxu0 %v1027
    %1457 = vmatpush.bf16.msra.mxu0 %v1024
    %1458 = vmatpush.bf16.msra.mxu0 %v1021
    %1459 = vmatpush.bf16.msra.mxu0 %v1018
    %1460 = vmatpush.bf16.msra.mxu0 %v1015
    %1461 = vmatpush.bf16.msra.mxu0 %v1012
    %1462 = vmatpush.bf16.msra.mxu0 %v1009
    %1463 = vmatpush.bf16.msra.mxu0 %v1006
    %1464 = vmatmul.bf16.gmra.mxu0 %v292
    %v1465 = vpop.f32.mrf.mxu0
    %v1466 = vadd.f32 %v1453, %v1465
    %v1467 = vpop.f32.mrf.mxu0
    %1468 = vdwg.mxu0
    %v1469 = vmax.f32 %v1284, 0.0
    %v1470 = vmax.f32 %v1375, 0.0
    %v1471 = vmax.f32 %v1466, 0.0
    %v1472 = vpack.c.bf16 %v1469, %v1469
    %v1473 = vpack.c.bf16 %v1470, %v1470
    %v1474 = vpack.c.bf16 %v1471, %v1471
    %v1475 = vld [vmem:[#allocation5] sm:$0xf]
    %v1476 = vld [vmem:[#allocation5 + $0x4] sm:$0xf]
    %v1477 = vld [vmem:[#allocation5 + $0x8] sm:$0xf]
    %v1478 = vld [vmem:[#allocation5 + $0xc] sm:$0xf]
    %v1479 = vld [vmem:[#allocation5 + $0x10] sm:$0xf]
    %v1480 = vld [vmem:[#allocation5 + $0x14] sm:$0xf]
    %v1481 = vld [vmem:[#allocation5 + $0x18] sm:$0xf]
    %v1482 = vld [vmem:[#allocation5 + $0x1c] sm:$0xf]
    %v1483 = vld [vmem:[#allocation5 + $0x20] sm:$0xf]
    %v1484 = vld [vmem:[#allocation5 + $0x24] sm:$0xf]
    %v1485 = vld [vmem:[#allocation5 + $0x28] sm:$0xf]
    %v1486 = vld [vmem:[#allocation5 + $0x2c] sm:$0xf]
    %v1487 = vld [vmem:[#allocation5 + $0x30] sm:$0xf]
    %v1488 = vld [vmem:[#allocation5 + $0x34] sm:$0xf]
    %v1489 = vld [vmem:[#allocation5 + $0x38] sm:$0xf]
    %v1490 = vld [vmem:[#allocation5 + $0x3c] sm:$0xf]
    %v1491 = vld [vmem:[#allocation5 + $0x40] sm:$0xf]
    %v1492 = vld [vmem:[#allocation5 + $0x44] sm:$0xf]
    %v1493 = vld [vmem:[#allocation5 + $0x48] sm:$0xf]
    %v1494 = vld [vmem:[#allocation5 + $0x4c] sm:$0xf]
    %v1495 = vld [vmem:[#allocation5 + $0x50] sm:$0xf]
    %v1496 = vld [vmem:[#allocation5 + $0x54] sm:$0xf]
    %v1497 = vld [vmem:[#allocation5 + $0x58] sm:$0xf]
    %v1498 = vld [vmem:[#allocation5 + $0x5c] sm:$0xf]
    %v1499 = vld [vmem:[#allocation5 + $0x60] sm:$0xf]
    %v1500 = vld [vmem:[#allocation5 + $0x64] sm:$0xf]
    %v1501 = vld [vmem:[#allocation5 + $0x68] sm:$0xf]
    %v1502 = vld [vmem:[#allocation5 + $0x6c] sm:$0xf]
    %v1503 = vld [vmem:[#allocation5 + $0x70] sm:$0xf]
    %v1504 = vld [vmem:[#allocation5 + $0x74] sm:$0xf]
    %v1505 = vld [vmem:[#allocation5 + $0x78] sm:$0xf]
    %v1506 = vld [vmem:[#allocation5 + $0x7c] sm:$0xf]
    %v1507 = vld [vmem:[#allocation5 + $0x80] sm:$0xf]
    %v1508 = vld [vmem:[#allocation5 + $0x84] sm:$0xf]
    %v1509 = vld [vmem:[#allocation5 + $0x88] sm:$0xf]
    %v1510 = vld [vmem:[#allocation5 + $0x8c] sm:$0xf]
    %v1511 = vld [vmem:[#allocation5 + $0x90] sm:$0xf]
    %v1512 = vld [vmem:[#allocation5 + $0x94] sm:$0xf]
    %v1513 = vld [vmem:[#allocation5 + $0x98] sm:$0xf]
    %v1514 = vld [vmem:[#allocation5 + $0x9c] sm:$0xf]
    %v1515 = vld [vmem:[#allocation5 + $0xa0] sm:$0xf]
    %v1516 = vld [vmem:[#allocation5 + $0xa4] sm:$0xf]
    %v1517 = vld [vmem:[#allocation5 + $0xa8] sm:$0xf]
    %v1518 = vld [vmem:[#allocation5 + $0xac] sm:$0xf]
    %v1519 = vld [vmem:[#allocation5 + $0xb0] sm:$0xf]
    %v1520 = vld [vmem:[#allocation5 + $0xb4] sm:$0xf]
    %v1521 = vld [vmem:[#allocation5 + $0xb8] sm:$0xf]
    %v1522 = vld [vmem:[#allocation5 + $0xbc] sm:$0xf]
    %v1571 = vunpack.c.l.b16 %v1475
    %v1572 = vunpack.c.l.b16 %v1476
    %v1573 = vunpack.c.l.b16 %v1477
    %v1574 = vunpack.c.l.b16 %v1478
    %v1575 = vunpack.c.l.b16 %v1479
    %v1576 = vunpack.c.l.b16 %v1480
    %v1577 = vunpack.c.l.b16 %v1481
    %v1578 = vunpack.c.l.b16 %v1482
    %v1579 = vunpack.c.l.b16 %v1483
    %v1580 = vunpack.c.l.b16 %v1484
    %v1581 = vunpack.c.l.b16 %v1485
    %v1582 = vunpack.c.l.b16 %v1486
    %v1583 = vunpack.c.l.b16 %v1487
    %v1584 = vunpack.c.l.b16 %v1488
    %v1585 = vunpack.c.l.b16 %v1489
    %v1586 = vunpack.c.l.b16 %v1490
    %v1587 = vunpack.c.l.b16 %v1491
    %v1588 = vunpack.c.l.b16 %v1492
    %v1589 = vunpack.c.l.b16 %v1493
    %v1590 = vunpack.c.l.b16 %v1494
    %v1591 = vunpack.c.l.b16 %v1495
    %v1592 = vunpack.c.l.b16 %v1496
    %v1593 = vunpack.c.l.b16 %v1497
    %v1594 = vunpack.c.l.b16 %v1498
    %v1595 = vunpack.c.l.b16 %v1499
    %v1596 = vunpack.c.l.b16 %v1500
    %v1597 = vunpack.c.l.b16 %v1501
    %v1598 = vunpack.c.l.b16 %v1502
    %v1599 = vunpack.c.l.b16 %v1503
    %v1600 = vunpack.c.l.b16 %v1504
    %v1601 = vunpack.c.l.b16 %v1505
    %v1602 = vunpack.c.l.b16 %v1506
    %v1603 = vunpack.c.l.b16 %v1507
    %v1604 = vunpack.c.l.b16 %v1508
    %v1605 = vunpack.c.l.b16 %v1509
    %v1606 = vunpack.c.l.b16 %v1510
    %v1607 = vunpack.c.l.b16 %v1511
    %v1608 = vunpack.c.l.b16 %v1512
    %v1609 = vunpack.c.l.b16 %v1513
    %v1610 = vunpack.c.l.b16 %v1514
    %v1611 = vunpack.c.l.b16 %v1515
    %v1612 = vunpack.c.l.b16 %v1516
    %v1613 = vunpack.c.l.b16 %v1517
    %v1614 = vunpack.c.l.b16 %v1518
    %v1615 = vunpack.c.l.b16 %v1519
    %v1616 = vunpack.c.l.b16 %v1520
    %v1617 = vunpack.c.l.b16 %v1521
    %v1618 = vunpack.c.l.b16 %v1522
    %v1619 = vpack.c.b16 %v1572, %v1571
    %v1620 = vpack.c.b16 %v1574, %v1573
    %v1621 = vpack.c.b16 %v1576, %v1575
    %v1622 = vpack.c.b16 %v1578, %v1577
    %v1623 = vpack.c.b16 %v1580, %v1579
    %v1624 = vpack.c.b16 %v1582, %v1581
    %v1625 = vpack.c.b16 %v1584, %v1583
    %v1626 = vpack.c.b16 %v1586, %v1585
    %v1627 = vpack.c.b16 %v1588, %v1587
    %v1628 = vpack.c.b16 %v1590, %v1589
    %v1629 = vpack.c.b16 %v1592, %v1591
    %v1630 = vpack.c.b16 %v1594, %v1593
    %v1631 = vpack.c.b16 %v1596, %v1595
    %v1632 = vpack.c.b16 %v1598, %v1597
    %v1633 = vpack.c.b16 %v1600, %v1599
    %v1634 = vpack.c.b16 %v1602, %v1601
    %v1635 = vpack.c.b16 %v1604, %v1603
    %v1636 = vpack.c.b16 %v1606, %v1605
    %v1637 = vpack.c.b16 %v1608, %v1607
    %v1638 = vpack.c.b16 %v1610, %v1609
    %v1639 = vpack.c.b16 %v1612, %v1611
    %v1640 = vpack.c.b16 %v1614, %v1613
    %v1641 = vpack.c.b16 %v1616, %v1615
    %v1642 = vpack.c.b16 %v1618, %v1617
    %1667 = vmatpush.bf16.msra.mxu0 %v1626
    %1668 = vmatpush.bf16.msra.mxu0 %v1625
    %1669 = vmatpush.bf16.msra.mxu0 %v1624
    %1670 = vmatpush.bf16.msra.mxu0 %v1623
    %1671 = vmatpush.bf16.msra.mxu0 %v1622
    %1672 = vmatpush.bf16.msra.mxu0 %v1621
    %1673 = vmatpush.bf16.msra.mxu0 %v1620
    %1674 = vmatpush.bf16.msra.mxu0 %v1619
    %1675 = vmatmul.bf16.gmra.mxu0 %v1472
    %v1676 = vpop.f32.mrf.mxu0
    %v1677 = vadd.f32 0.0, %v1676
    %v1678 = vpop.f32.mrf.mxu0
    %1679 = vdwg.mxu0
    %1680 = vmatpush.bf16.msra.mxu0 %v1634
    %1681 = vmatpush.bf16.msra.mxu0 %v1633
    %1682 = vmatpush.bf16.msra.mxu0 %v1632
    %1683 = vmatpush.bf16.msra.mxu0 %v1631
    %1684 = vmatpush.bf16.msra.mxu0 %v1630
    %1685 = vmatpush.bf16.msra.mxu0 %v1629
    %1686 = vmatpush.bf16.msra.mxu0 %v1628
    %1687 = vmatpush.bf16.msra.mxu0 %v1627
    %1688 = vmatmul.bf16.gmra.mxu0 %v1473
    %v1689 = vpop.f32.mrf.mxu0
    %v1690 = vadd.f32 %v1677, %v1689
    %v1691 = vpop.f32.mrf.mxu0
    %1692 = vdwg.mxu0
    %1693 = vmatpush.bf16.msra.mxu0 %v1642
    %1694 = vmatpush.bf16.msra.mxu0 %v1641
    %1695 = vmatpush.bf16.msra.mxu0 %v1640
    %1696 = vmatpush.bf16.msra.mxu0 %v1639
    %1697 = vmatpush.bf16.msra.mxu0 %v1638
    %1698 = vmatpush.bf16.msra.mxu0 %v1637
    %1699 = vmatpush.bf16.msra.mxu0 %v1636
    %1700 = vmatpush.bf16.msra.mxu0 %v1635
    %1701 = vmatmul.bf16.gmra.mxu0 %v1474
    %v1702 = vpop.f32.mrf.mxu0
    %v1703 = vadd.f32 %v1690, %v1702
    %v1704 = vpop.f32.mrf.mxu0
    %1705 = vdwg.mxu0
    %v1706 = vmax.f32 %v1703, 0.0
    %v1707 = vlaneseq
    %v1708 = vand.u32 %v1707, 127
    %vm1709 = vcmp.lt.s32.totalorder %v1708, 10
    %v1710 = vsel %vm1709, %v1706, -inf
    %1711 = vmax.xlane.f32.xlu0 %v1710
    %v1712 = vpop.xlane.xlu0 %1711
    %v1713 = vsub.f32 %v1710, %v1712
    %v1714 = vmul.f32 %v1713, 1.442695
    %v1715 = vpow.pop %v1714
    %1716 = vadd.xlane.f32.xlu0 %v1715
    %v1717 = vpop.xlane.xlu0 %1716
    %v1718 = vlog2.pop %v1717
    %v1719 = vmul.f32 %v1718, 0.6931472
    %v1720 = vsub.f32 %v1713, %v1719
    %1721 = vst [vmem:[#allocation7] sm:$0xff] %v1720
    // Predicated region
    $region22: #{two_layer_net.1} parent=1 // pred_check
      _
    $region23: #{two_layer_net.1} parent=1 // pred_check_branch
      %1723 = sbr.rel (0) target = $region25
    $region24: #{two_layer_net.1} parent=1 // pred_region
      %1725 = vsyncadd [#allocation4], 0
      %s1727 = sshll.u32 [#allocation7], 4
      %s1728 = int_to_ptr.vmem [resolvable:$true] %s1727
      %s1729 = sshll.u32 %s3, 4
      %s1730 = int_to_ptr.hbm [resolvable:$true] %s1729
      %1732 = dma.vmem_to_hbm [thread:$0]  %s1728, 128, %s1730, [#allocation4]
    $region25: #{two_layer_net.1} parent=1 // pred_fallthru
      _
    // Predicated region
    $region26: #{two_layer_net.1} parent=1 // pred_check
      _
    $region27: #{two_layer_net.1} parent=1 // pred_check_branch
      %1734 = sbr.rel (0) target = $region29
    $region28: #{two_layer_net.1} parent=1 // pred_region
      %1736 = dma.done [#allocation4], 128
    $region29: #{two_layer_net.1} parent=1 // pred_fallthru
      _
    %1737 = vsyncpa [#allocation3], 1
    %1738 = vsyncpa [#allocation6], 1
    %1739 = vsyncpa [#allocation4], 1

</llo_original>
